<compile_context>
chip_gen: v7x
topology: tpu7x:2x2x1
jax: 0.10.0
libtpu: 0.0.40
codegen_flags: <defaults>
</compile_context>

<pallas_src>
import functools

import jax
import jax.numpy as jnp
from jax.experimental import pallas as pl
from jax.experimental.pallas import tpu as pltpu


def _patch_embed_kernel(cur_ref, halo_ref, w_ref, o_ref, a_scr, *, W, THW, Cinp):
    """One (batch, row-band) step: 3x3 same-conv -> (THW, embed_dim) token tile.

    cur_ref:  (1, Cinp, THW)      bf16 flattened current row-band.
    halo_ref: (1, 1, 2, Cinp, W+1) bf16 halo rows:
              [0] = [zero-col | row-above-band], [1] = [row-below-band | zero-col]
              (already zeroed at the image borders by the wrapper).
    w_ref:    (Kpad, Cout) bf16 im2col weight matrix, rows ordered (tap, ci),
              channel-padded rows are zero.
    o_ref:    (1, THW, Cout) output tokens for this band (final layout).
    a_scr:    (Kpad, THW) bf16 VMEM scratch holding the im2col LHS.
    """
    cur = cur_ref[0]                              # (Cinp, THW)
    top = halo_ref[0, 0, 0]                       # (Cinp, W+1)  [0 | row above]
    bot = halo_ref[0, 0, 1]                       # (Cinp, W+1)  [row below | 0]

    # Row-band with vertical halo + leading/trailing zero column, flattened, so
    # every tap is a non-negative static lane-offset slice of length THW.
    ext = jnp.concatenate([top, cur, bot], axis=1)        # (Cinp, THW + 2W + 2)
    ext_len = THW + 2 * W + 2

    # Horizontal border handling, hoisted out of the 9-tap loop: source pixels
    # in the last image column must not be read as a "left neighbour" (dj=0),
    # and ones in the first image column not as a "right neighbour" (dj=2).
    ecol = jax.lax.broadcasted_iota(jnp.int32, (1, ext_len), 1)
    ecol = (ecol - 1) % W                         # image column of each position
    zeros = jnp.zeros_like(ext)
    ext_l = jnp.where(ecol == W - 1, zeros, ext)  # sources read by dj=0 taps
    ext_r = jnp.where(ecol == 0, zeros, ext)      # sources read by dj=2 taps
    variants = (ext_l, ext, ext_r)

    # Build the im2col LHS: rows [t*Cinp, (t+1)*Cinp) hold the band shifted by
    # tap t=(di,dj).  Row groups are sublane aligned (Cinp % 8 == 0) and the
    # channel-pad rows are written as real zeros by these same stores.
    for di in range(3):
        for dj in range(3):
            t = di * 3 + dj
            off = di * W + dj
            a_scr[t * Cinp:(t + 1) * Cinp, :] = variants[dj][:, off:off + THW]

    # Single folded matmul: (Kpad, THW) contracted on dim 0 with (Kpad, Cout)
    # -> (THW, Cout), bf16 feeds, f32 accumulation, result already token-layout.
    out = jax.lax.dot_general(a_scr[...], w_ref[...],
                              dimension_numbers=(((0,), (0,)), ((), ())),
                              preferred_element_type=jnp.float32)
    o_ref[0] = out.astype(o_ref.dtype)


def _pick_rows_per_tile(H, W, target_lanes):
    """Largest TH dividing H with TH*W % 128 == 0, within the lane budget,
    preferring >= 2 row-bands so both v7x TensorCores get grid steps."""
    cands = [th for th in range(1, H + 1)
             if H % th == 0 and (th * W) % 128 == 0]
    multi = [th for th in cands if H // th >= 2]
    pool = multi if multi else cands
    fits = [th for th in pool if th * W <= target_lanes]
    if fits:
        return fits[-1]
    if pool:
        return pool[0]
    return H      # whole image per step; block == full dim is always legal


def overlap_patch_embed(x, weight, *, rows_per_tile=None, target_lanes=4096):
    """OverlapPatchEmbed forward.

    x:      (B, in_c, H, W)         NCHW input (PyTorch layout)
    weight: (embed_dim, in_c, 3, 3) OIHW conv weight, no bias
    returns (B, H*W, embed_dim)
    """
    B, Cin, H, W = x.shape
    Cout = weight.shape[0]
    assert weight.shape == (Cout, Cin, 3, 3)
    L = H * W
    out_dtype = x.dtype
    out_isz = jnp.dtype(out_dtype).itemsize

    TH = (rows_per_tile if rows_per_tile is not None
          else _pick_rows_per_tile(H, W, target_lanes))
    assert H % TH == 0, "rows_per_tile must divide H"
    THW = TH * W
    nrt = H // TH

    Cinp = ((Cin + 7) // 8) * 8          # sublane-aligned channel count
    Kpad = 9 * Cinp

    # bf16 cast halves input HBM traffic; channel-pad so all kernel-side tap
    # stores are sublane aligned and pad rows are genuine zeros.
    xb = x.astype(jnp.bfloat16)
    if Cinp > Cin:
        xb = jnp.pad(xb, ((0, 0), (0, Cinp - Cin), (0, 0), (0, 0)))
    x_flat = xb.reshape(B, Cinp, L)       # 'b c h w -> b c (h w)' free reshape

    # Per-band halo rows (tiny): band r gets the last row of band r-1 and the
    # first row of band r+1, zeroed at the image borders, each with the conv's
    # leading / trailing zero column already attached.
    xbands = xb.reshape(B, Cinp, nrt, TH, W)
    zrow = jnp.zeros((B, Cinp, 1, W), xb.dtype)
    above = jnp.concatenate([zrow, xbands[:, :, :nrt - 1, TH - 1, :]], axis=2)
    below = jnp.concatenate([xbands[:, :, 1:, 0, :], zrow], axis=2)
    zcol = jnp.zeros((B, Cinp, nrt, 1), xb.dtype)
    top_h = jnp.concatenate([zcol, above], axis=3)        # (B,Cinp,nrt,W+1)
    bot_h = jnp.concatenate([below, zcol], axis=3)        # (B,Cinp,nrt,W+1)
    halo = jnp.stack([top_h, bot_h], axis=2)              # (B,Cinp,2,nrt,W+1)
    halo = jnp.transpose(halo, (0, 3, 2, 1, 4))           # (B,nrt,2,Cinp,W+1)

    # Weight as an im2col matrix (Kpad, Cout), rows ordered (tap, ci) with the
    # channel-pad rows zero.  Done once in the wrapper.
    wt = jnp.transpose(weight, (2, 3, 1, 0)).astype(jnp.bfloat16)  # (3,3,Cin,Cout)
    if Cinp > Cin:
        wt = jnp.pad(wt, ((0, 0), (0, 0), (0, Cinp - Cin), (0, 0)))
    w_mat = wt.reshape(Kpad, Cout)

    kernel = functools.partial(_patch_embed_kernel, W=W, THW=THW, Cinp=Cinp)

    # Real per-step VMEM footprint (lane-padded, double-buffered I/O) + headroom.
    def _lanes(n):
        return ((n + 127) // 128) * 128
    step_bytes = (2 * Cinp * _lanes(THW) * 2              # current band (bf16)
                  + 2 * 2 * Cinp * _lanes(W + 1) * 2      # halo rows (bf16)
                  + 2 * Kpad * _lanes(Cout) * 2           # weight (bf16)
                  + 2 * THW * _lanes(Cout) * out_isz      # output tile
                  + Kpad * _lanes(THW) * 2)               # im2col scratch (bf16)
    vmem_limit = int(min(max(32 * 2**20, 2 * step_bytes + 8 * 2**20), 56 * 2**20))

    flops = 2 * B * L * 9 * Cin * Cout
    bytes_accessed = (x_flat.size * 2 + halo.size * 2 + w_mat.size * 2
                      + B * L * Cout * out_isz)

    return pl.pallas_call(
        kernel,
        out_shape=jax.ShapeDtypeStruct((B, L, Cout), out_dtype),
        grid=(B, nrt),
        in_specs=[
            # Current row-band: each input element is read from HBM exactly once.
            pl.BlockSpec((1, Cinp, THW), lambda b, r: (b, 0, r)),
            # Tiny halo block for this band (last two dims are full extents,
            # so the BlockSpec is legal for any W).
            pl.BlockSpec((1, 1, 2, Cinp, W + 1), lambda b, r: (b, r, 0, 0, 0)),
            # Small weight matrix, same block every step (stays VMEM-resident).
            pl.BlockSpec((Kpad, Cout), lambda b, r: (0, 0)),
        ],
        out_specs=pl.BlockSpec((1, THW, Cout), lambda b, r: (b, r, 0)),
        scratch_shapes=[pltpu.VMEM((Kpad, THW), jnp.bfloat16)],
        compiler_params=pltpu.CompilerParams(
            dimension_semantics=("parallel", "parallel"),
            vmem_limit_bytes=vmem_limit),
        cost_estimate=pl.CostEstimate(
            flops=flops, transcendentals=0, bytes_accessed=bytes_accessed),
    )(x_flat, halo, w_mat)


def _reference(x, weight):
    """Pure-JAX reference (lax conv, NCHW) mirroring the PyTorch module."""
    y = jax.lax.conv_general_dilated(
        x, weight, window_strides=(1, 1), padding=((1, 1), (1, 1)),
        dimension_numbers=("NCHW", "OIHW", "NCHW"))
    B, Co, H, W = y.shape
    return jnp.transpose(y, (0, 2, 3, 1)).reshape(B, H * W, Co)


if __name__ == "__main__":
    B, Cin, H, W = 2, 3, 16, 16
    embed_dim = 48

    key = jax.random.PRNGKey(0)
    kx, kw = jax.random.split(key)
    x = jax.random.normal(kx, (B, Cin, H, W), dtype=jnp.float32)
    fan_in = Cin * 3 * 3
    bound = 1.0 / (fan_in ** 0.5)
    weight = jax.random.uniform(kw, (embed_dim, Cin, 3, 3), jnp.float32,
                                minval=-bound, maxval=bound)

    # Default path: two row-bands (exercises the interior halo exchange).
    out = jax.block_until_ready(overlap_patch_embed(x, weight))
    # Single-band path (border-only halos).
    out_1band = jax.block_until_ready(
        overlap_patch_embed(x, weight, rows_per_tile=16))
    ref = jax.block_until_ready(_reference(x, weight))

    assert out.shape == (B, H * W, embed_dim), out.shape
    # bf16 matmul feeds (f32 accumulation) -> widened tolerance vs f32 reference.
    assert jnp.allclose(out, ref, atol=5e-2, rtol=5e-2), "mismatch vs reference"
    assert jnp.allclose(out_1band, ref, atol=5e-2, rtol=5e-2), "mismatch (1 band)"

    print("KERNEL_OK")
</pallas_src>

<mosaic_0001>
module attributes {stable_mosaic.version = 11 : i64} {
  func.func @_patch_embed_kernel(%arg0: i32, %arg1: i32, %arg2: memref<1x8x128xbf16, #tpu.memory_space<vmem>>, %arg3: memref<1x1x2x8x17xbf16, #tpu.memory_space<vmem>>, %arg4: memref<72x48xbf16, #tpu.memory_space<vmem>>, %arg5: memref<1x128x48xf32, #tpu.memory_space<vmem>>, %arg6: memref<72x128xbf16, #tpu.memory_space<vmem>>) attributes {dimension_semantics = [#tpu.dimension_semantics<parallel>, #tpu.dimension_semantics<parallel>], iteration_bounds = array<i64: 2, 2>, scalar_prefetch = 0 : i64, scratch_operands = 1 : i64, tpu.core_type = #tpu.core_type<tc>, window_params = [{transform_indices = @transform_0, window_bounds = array<i64: 1, 8, 128>}, {transform_indices = @transform_1, window_bounds = array<i64: 1, 1, 2, 8, 17>}, {pipeline_mode = #tpu.pipeline_mode<synchronous>, transform_indices = @transform_2, window_bounds = array<i64: 72, 48>}, {transform_indices = @transform_3, window_bounds = array<i64: 1, 128, 48>}]} {
    %c0 = arith.constant 0 : index
    %c0_0 = arith.constant 0 : index
    %c0_1 = arith.constant 0 : index
    %0 = vector.load %arg2[%c0, %c0_0, %c0_1] : memref<1x8x128xbf16, #tpu.memory_space<vmem>>, vector<1x8x128xbf16>
    %1 = vector.shape_cast %0 : vector<1x8x128xbf16> to vector<8x128xbf16>
    %c0_2 = arith.constant 0 : index
    %c0_3 = arith.constant 0 : index
    %c0_4 = arith.constant 0 : index
    %c0_5 = arith.constant 0 : index
    %c0_6 = arith.constant 0 : index
    %2 = vector.load %arg3[%c0_2, %c0_3, %c0_4, %c0_5, %c0_6] : memref<1x1x2x8x17xbf16, #tpu.memory_space<vmem>>, vector<1x1x1x8x17xbf16>
    %3 = vector.shape_cast %2 : vector<1x1x1x8x17xbf16> to vector<8x17xbf16>
    %c0_7 = arith.constant 0 : index
    %c0_8 = arith.constant 0 : index
    %c1 = arith.constant 1 : index
    %c0_9 = arith.constant 0 : index
    %c0_10 = arith.constant 0 : index
    %4 = vector.load %arg3[%c0_7, %c0_8, %c1, %c0_9, %c0_10] : memref<1x1x2x8x17xbf16, #tpu.memory_space<vmem>>, vector<1x1x1x8x17xbf16>
    %5 = vector.shape_cast %4 : vector<1x1x1x8x17xbf16> to vector<8x17xbf16>
    %6 = tpu.concatenate %3, %1, %5 in 1 : vector<8x17xbf16>, vector<8x128xbf16>, vector<8x17xbf16> -> vector<8x162xbf16>
    %7 = tpu.iota {dimensions = array<i32: 1>} : vector<1x162xi32>
    %c1_i32 = arith.constant 1 : i32
    %8 = vector.broadcast %c1_i32 : i32 to vector<1x162xi32>
    %9 = arith.subi %7, %8 : vector<1x162xi32>
    %c16_i32 = arith.constant 16 : i32
    %c0_i32 = arith.constant 0 : i32
    %10 = arith.cmpi eq, %c16_i32, %c0_i32 : i32
    %c1_i32_11 = arith.constant 1 : i32
    %11 = arith.select %10, %c1_i32_11, %c16_i32 : i32
    %12 = vector.broadcast %11 : i32 to vector<1x162xi32>
    %13 = arith.remsi %9, %12 : vector<1x162xi32>
    %c0_i32_12 = arith.constant 0 : i32
    %14 = vector.broadcast %c0_i32_12 : i32 to vector<1x162xi32>
    %15 = arith.cmpi ne, %13, %14 : vector<1x162xi32>
    %c0_i32_13 = arith.constant 0 : i32
    %16 = vector.broadcast %c0_i32_13 : i32 to vector<1x162xi32>
    %17 = arith.cmpi slt, %13, %16 : vector<1x162xi32>
    %c0_i32_14 = arith.constant 0 : i32
    %18 = arith.cmpi slt, %11, %c0_i32_14 : i32
    %19 = vector.broadcast %18 : i1 to vector<1x162xi1>
    %20 = vector.broadcast %19 : vector<1x162xi1> to vector<1x162xi1>
    %21 = arith.xori %17, %20 : vector<1x162xi1>
    %22 = arith.andi %21, %15 : vector<1x162xi1>
    %23 = vector.broadcast %11 : i32 to vector<1x162xi32>
    %24 = arith.addi %13, %23 : vector<1x162xi32>
    %25 = arith.select %22, %24, %13 : vector<1x162xi1>, vector<1x162xi32>
    %cst = arith.constant 0.000000e+00 : bf16
    %26 = vector.broadcast %cst : bf16 to vector<8x162xbf16>
    %c15_i32 = arith.constant 15 : i32
    %27 = vector.broadcast %c15_i32 : i32 to vector<1x162xi32>
    %28 = arith.cmpi eq, %25, %27 : vector<1x162xi32>
    %29 = vector.shape_cast %28 : vector<1x162xi1> to vector<1x162xi1>
    %30 = vector.broadcast %29 : vector<1x162xi1> to vector<8x162xi1>
    %31 = arith.select %30, %26, %6 : vector<8x162xi1>, vector<8x162xbf16>
    %c0_i32_15 = arith.constant 0 : i32
    %32 = vector.broadcast %c0_i32_15 : i32 to vector<1x162xi32>
    %33 = arith.cmpi eq, %25, %32 : vector<1x162xi32>
    %34 = vector.shape_cast %33 : vector<1x162xi1> to vector<1x162xi1>
    %35 = vector.broadcast %34 : vector<1x162xi1> to vector<8x162xi1>
    %36 = arith.select %35, %26, %6 : vector<8x162xi1>, vector<8x162xbf16>
    %37 = vector.extract_strided_slice %31 {offsets = [0, 0], sizes = [8, 128], strides = [1, 1]} : vector<8x162xbf16> to vector<8x128xbf16>
    %c0_16 = arith.constant 0 : index
    %c0_17 = arith.constant 0 : index
    %38 = vector.load %arg6[%c0_16, %c0_17] : memref<72x128xbf16, #tpu.memory_space<vmem>>, vector<8x128xbf16>
    tpu.vector_store %arg6[%c0_16, %c0_17], %37 {strides = array<i32>} : memref<72x128xbf16, #tpu.memory_space<vmem>>, vector<8x128xbf16>,
    %39 = vector.extract_strided_slice %6 {offsets = [0, 1], sizes = [8, 128], strides = [1, 1]} : vector<8x162xbf16> to vector<8x128xbf16>
    %c8 = arith.constant 8 : index
    %c0_18 = arith.constant 0 : index
    %40 = vector.load %arg6[%c8, %c0_18] : memref<72x128xbf16, #tpu.memory_space<vmem>>, vector<8x128xbf16>
    tpu.vector_store %arg6[%c8, %c0_18], %39 {strides = array<i32>} : memref<72x128xbf16, #tpu.memory_space<vmem>>, vector<8x128xbf16>,
    %41 = vector.extract_strided_slice %36 {offsets = [0, 2], sizes = [8, 128], strides = [1, 1]} : vector<8x162xbf16> to vector<8x128xbf16>
    %c16 = arith.constant 16 : index
    %c0_19 = arith.constant 0 : index
    %42 = vector.load %arg6[%c16, %c0_19] : memref<72x128xbf16, #tpu.memory_space<vmem>>, vector<8x128xbf16>
    tpu.vector_store %arg6[%c16, %c0_19], %41 {strides = array<i32>} : memref<72x128xbf16, #tpu.memory_space<vmem>>, vector<8x128xbf16>,
    %43 = vector.extract_strided_slice %31 {offsets = [0, 16], sizes = [8, 128], strides = [1, 1]} : vector<8x162xbf16> to vector<8x128xbf16>
    %c24 = arith.constant 24 : index
    %c0_20 = arith.constant 0 : index
    %44 = vector.load %arg6[%c24, %c0_20] : memref<72x128xbf16, #tpu.memory_space<vmem>>, vector<8x128xbf16>
    tpu.vector_store %arg6[%c24, %c0_20], %43 {strides = array<i32>} : memref<72x128xbf16, #tpu.memory_space<vmem>>, vector<8x128xbf16>,
    %45 = vector.extract_strided_slice %6 {offsets = [0, 17], sizes = [8, 128], strides = [1, 1]} : vector<8x162xbf16> to vector<8x128xbf16>
    %c32 = arith.constant 32 : index
    %c0_21 = arith.constant 0 : index
    %46 = vector.load %arg6[%c32, %c0_21] : memref<72x128xbf16, #tpu.memory_space<vmem>>, vector<8x128xbf16>
    tpu.vector_store %arg6[%c32, %c0_21], %45 {strides = array<i32>} : memref<72x128xbf16, #tpu.memory_space<vmem>>, vector<8x128xbf16>,
    %47 = vector.extract_strided_slice %36 {offsets = [0, 18], sizes = [8, 128], strides = [1, 1]} : vector<8x162xbf16> to vector<8x128xbf16>
    %c40 = arith.constant 40 : index
    %c0_22 = arith.constant 0 : index
    %48 = vector.load %arg6[%c40, %c0_22] : memref<72x128xbf16, #tpu.memory_space<vmem>>, vector<8x128xbf16>
    tpu.vector_store %arg6[%c40, %c0_22], %47 {strides = array<i32>} : memref<72x128xbf16, #tpu.memory_space<vmem>>, vector<8x128xbf16>,
    %49 = vector.extract_strided_slice %31 {offsets = [0, 32], sizes = [8, 128], strides = [1, 1]} : vector<8x162xbf16> to vector<8x128xbf16>
    %c48 = arith.constant 48 : index
    %c0_23 = arith.constant 0 : index
    %50 = vector.load %arg6[%c48, %c0_23] : memref<72x128xbf16, #tpu.memory_space<vmem>>, vector<8x128xbf16>
    tpu.vector_store %arg6[%c48, %c0_23], %49 {strides = array<i32>} : memref<72x128xbf16, #tpu.memory_space<vmem>>, vector<8x128xbf16>,
    %51 = vector.extract_strided_slice %6 {offsets = [0, 33], sizes = [8, 128], strides = [1, 1]} : vector<8x162xbf16> to vector<8x128xbf16>
    %c56 = arith.constant 56 : index
    %c0_24 = arith.constant 0 : index
    %52 = vector.load %arg6[%c56, %c0_24] : memref<72x128xbf16, #tpu.memory_space<vmem>>, vector<8x128xbf16>
    tpu.vector_store %arg6[%c56, %c0_24], %51 {strides = array<i32>} : memref<72x128xbf16, #tpu.memory_space<vmem>>, vector<8x128xbf16>,
    %53 = vector.extract_strided_slice %36 {offsets = [0, 34], sizes = [8, 128], strides = [1, 1]} : vector<8x162xbf16> to vector<8x128xbf16>
    %c64 = arith.constant 64 : index
    %c0_25 = arith.constant 0 : index
    %54 = vector.load %arg6[%c64, %c0_25] : memref<72x128xbf16, #tpu.memory_space<vmem>>, vector<8x128xbf16>
    tpu.vector_store %arg6[%c64, %c0_25], %53 {strides = array<i32>} : memref<72x128xbf16, #tpu.memory_space<vmem>>, vector<8x128xbf16>,
    %c0_26 = arith.constant 0 : index
    %c0_27 = arith.constant 0 : index
    %55 = vector.load %arg6[%c0_26, %c0_27] : memref<72x128xbf16, #tpu.memory_space<vmem>>, vector<72x128xbf16>
    %c0_28 = arith.constant 0 : index
    %c0_29 = arith.constant 0 : index
    %56 = vector.load %arg4[%c0_28, %c0_29] : memref<72x48xbf16, #tpu.memory_space<vmem>>, vector<72x48xbf16>
    %cst_30 = arith.constant dense<0.000000e+00> : vector<128x48xf32>
    %57 = tpu.matmul %55, %56, %cst_30 {dimension_numbers = #tpu.dot_dimension_numbers<[0], [0], [1], [1], [0, 1, 1, 1], [], []>} : vector<72x128xbf16>, vector<72x48xbf16>, vector<128x48xf32> -> vector<128x48xf32>
    %c0_31 = arith.constant 0 : index
    %c0_32 = arith.constant 0 : index
    %c0_33 = arith.constant 0 : index
    %58 = vector.load %arg5[%c0_31, %c0_32, %c0_33] : memref<1x128x48xf32, #tpu.memory_space<vmem>>, vector<1x128x48xf32>
    %59 = vector.shape_cast %58 : vector<1x128x48xf32> to vector<128x48xf32>
    %60 = vector.shape_cast %57 : vector<128x48xf32> to vector<1x128x48xf32>
    tpu.vector_store %arg5[%c0_31, %c0_32, %c0_33], %60 {strides = array<i32>} : memref<1x128x48xf32, #tpu.memory_space<vmem>>, vector<1x128x48xf32>,
    return
  }
  func.func @transform_0(%arg0: i32, %arg1: i32) -> (i32, i32, i32) {
    %c0_i32 = arith.constant 0 : i32
    %c0_i32_0 = arith.constant 0 : i32
    return %arg0, %c0_i32, %arg1 : i32, i32, i32
  }
  func.func @transform_1(%arg0: i32, %arg1: i32) -> (i32, i32, i32, i32, i32) {
    %c0_i32 = arith.constant 0 : i32
    %c0_i32_0 = arith.constant 0 : i32
    %c0_i32_1 = arith.constant 0 : i32
    %c0_i32_2 = arith.constant 0 : i32
    return %arg0, %arg1, %c0_i32, %c0_i32_0, %c0_i32_1 : i32, i32, i32, i32, i32
  }
  func.func @transform_2(%arg0: i32, %arg1: i32) -> (i32, i32) {
    %c0_i32 = arith.constant 0 : i32
    %c0_i32_0 = arith.constant 0 : i32
    %c0_i32_1 = arith.constant 0 : i32
    return %c0_i32, %c0_i32_0 : i32, i32
  }
  func.func @transform_3(%arg0: i32, %arg1: i32) -> (i32, i32, i32) {
    %c0_i32 = arith.constant 0 : i32
    %c0_i32_0 = arith.constant 0 : i32
    return %arg0, %arg1, %c0_i32 : i32, i32, i32
  }
}

</mosaic_0001>

<llo_original>
// kernel: tpu_custom_call.1
$region0: #{tpu_custom_call.1}
  #allocation0 [shape = 'u32[]', space=smem, size = 0x4, offset = 0x4, fixed_abs, tag = 'smem constant byte address 0x4 - core index']
  #allocation1 [shape = 'u32[144,128]{1,0:T(1,128)}', space=vmem, size = 0x12000, scoped, tag = 'internal scratch']
  #allocation2 [shape = 'bf16[72,128]{1,0:T(8,128)(2,1)}', space=vmem, size = 0x4800, scoped, tag = 'scratch operand']
  %s0 = inlined_call_operand.vmem [shape: bf16[2,8,256], index: 0, kind: input, shape index: {}]
  %s1 = inlined_call_operand.vmem [shape: bf16[2,2,2,8,17], index: 1, kind: input, shape index: {}]
  %s2 = inlined_call_operand.vmem [shape: bf16[72,48], index: 2, kind: input, shape index: {}]
  %s3 = inlined_call_operand.vmem [shape: f32[2,256,48], index: 3, kind: output, shape index: {}]
  %s4 = sld [smem:[#allocation0]]
  $region45: #{tpu_custom_call.1} parent=0
    _
  %s6 = ssub.s32 1, %s4
  %s7 = scalar_select 0, %s6, %s4
  loop: start=0, step=1, limit=6
  $region2: #{tpu_custom_call.1} parent=0 // loop_pre_header
    _
  $region3: #{tpu_custom_call.1} parent=0 // loop_header
    %s9 = sphi 0, %s13
    %p10 = scmp.ge.s32.totalorder %s9, 6
    %s16 = sphi 0, %s28
    %s17 = sphi 0, %s24
    %s18 = sphi 0, %s16
    %s19 = sphi 0, %s17
    %s20 = sphi 0, %s18
    %s21 = sphi 0, %s19
    %s33 = sphi 0, %s35
    %s36 = sphi 0, %s33
    %s37 = sphi 0, %s36
    %s53 = sphi 0, %s37
    %s61 = sphi 0, %s63
    %s64 = sphi 0, %s61
    %s65 = sphi 0, %s64
    %s81 = sphi 0, %s65
    %s85 = sphi 0, %s85
    %s87 = sphi 0, %s85
    %s88 = sphi 0, %s87
    %s102 = sphi 0, %s88
    %s110 = sphi 0, %s112
    %s113 = sphi 0, %s110
    %s114 = sphi 0, %s113
    %s130 = sphi 0, %s114
  $region4: #{tpu_custom_call.1} parent=0 // loop_header_branch
    %12 = sbr.rel (%p10) target = $region8
  $region5: #{tpu_custom_call.1} parent=0 // loop_body
    %s14 = ssub.s32 %s9, 1
    %s15 = ssub.s32 %s9, 2
    %s22 = sadd.s32 1, %s17
    %p23 = scmp.ge.s32.totalorder %s22, 2
    %s24 = scalar_select %p23, 0, %s22
    %s25 = sadd.s32 1, %s16
    %s26 = scalar_select %p23, %s25, %s16
    %p27 = scmp.ge.s32.totalorder %s26, 2
    %s28 = scalar_select %p27, 0, %s26
    %s29 = ssub.s32 %s16, %s28
    %s30 = ssub.s32 %s17, %s24
    %s31 = sor.u32 %s29, %s30
    %p32 = scmp.eq.s32.totalorder %s31, 0
    %s34 = sadd.s32 %s33, 1
    %s35 = scalar_select %p32, %s33, %s34
    %p38 = pneg %p32
    %p39 = scmp.eq.s32.totalorder %s9, 3
    %p40 = por %p38, %p39
    %p41 = scmp.ne.s32.totalorder %s33, %s36
    %p42 = scmp.eq.s32.totalorder %s9, 0
    %p43 = por %p41, %p42
    %p44 = scmp.ne.s32.totalorder %s33, %s36
    %p45 = scmp.eq.s32.totalorder %s14, 3
    %p46 = por %p44, %p45
    %p47 = scmp.ne.s32.totalorder %s36, %s37
    %p48 = scmp.eq.s32.totalorder %s14, 0
    %p49 = por %p47, %p48
    %p50 = scmp.ne.s32.totalorder %s36, %s37
    %p51 = scmp.eq.s32.totalorder %s15, 3
    %p52 = por %p50, %p51
    %p54 = scmp.ne.s32.totalorder %s37, %s53
    %p55 = scmp.eq.s32.totalorder %s15, 0
    %p56 = por %p54, %p55
    %s57 = ssub.s32 %s16, %s28
    %s58 = ssub.s32 %s17, %s24
    %s59 = sor.u32 %s57, %s58
    %p60 = scmp.eq.s32.totalorder %s59, 0
    %s62 = sadd.s32 %s61, 1
    %s63 = scalar_select %p60, %s61, %s62
    %p66 = pneg %p60
    %p67 = scmp.eq.s32.totalorder %s9, 3
    %p68 = por %p66, %p67
    %p69 = scmp.ne.s32.totalorder %s61, %s64
    %p70 = scmp.eq.s32.totalorder %s9, 0
    %p71 = por %p69, %p70
    %p72 = scmp.ne.s32.totalorder %s61, %s64
    %p73 = scmp.eq.s32.totalorder %s14, 3
    %p74 = por %p72, %p73
    %p75 = scmp.ne.s32.totalorder %s64, %s65
    %p76 = scmp.eq.s32.totalorder %s14, 0
    %p77 = por %p75, %p76
    %p78 = scmp.ne.s32.totalorder %s64, %s65
    %p79 = scmp.eq.s32.totalorder %s15, 3
    %p80 = por %p78, %p79
    %p82 = scmp.ne.s32.totalorder %s65, %s81
    %p83 = scmp.eq.s32.totalorder %s15, 0
    %p84 = por %p82, %p83
    %s86 = sadd.s32 %s85, 1
    %p89 = scmp.eq.s32.totalorder %s9, 3
    %p90 = scmp.ne.s32.totalorder %s85, %s87
    %p91 = scmp.eq.s32.totalorder %s9, 0
    %p92 = por %p90, %p91
    %p93 = scmp.ne.s32.totalorder %s85, %s87
    %p94 = scmp.eq.s32.totalorder %s14, 3
    %p95 = por %p93, %p94
    %p96 = scmp.ne.s32.totalorder %s87, %s88
    %p97 = scmp.eq.s32.totalorder %s14, 0
    %p98 = por %p96, %p97
    %p99 = scmp.ne.s32.totalorder %s87, %s88
    %p100 = scmp.eq.s32.totalorder %s15, 3
    %p101 = por %p99, %p100
    %p103 = scmp.ne.s32.totalorder %s88, %s102
    %p104 = scmp.eq.s32.totalorder %s15, 0
    %p105 = por %p103, %p104
    %s106 = ssub.s32 %s16, %s28
    %s107 = ssub.s32 %s17, %s24
    %s108 = sor.u32 %s106, %s107
    %p109 = scmp.eq.s32.totalorder %s108, 0
    %s111 = sadd.s32 %s110, 1
    %s112 = scalar_select %p109, %s110, %s111
    %p115 = pneg %p109
    %p116 = scmp.eq.s32.totalorder %s9, 3
    %p117 = por %p115, %p116
    %p118 = scmp.ne.s32.totalorder %s110, %s113
    %p119 = scmp.eq.s32.totalorder %s9, 0
    %p120 = por %p118, %p119
    %p121 = scmp.ne.s32.totalorder %s110, %s113
    %p122 = scmp.eq.s32.totalorder %s14, 3
    %p123 = por %p121, %p122
    %p124 = scmp.ne.s32.totalorder %s113, %s114
    %p125 = scmp.eq.s32.totalorder %s14, 0
    %p126 = por %p124, %p125
    %p127 = scmp.ne.s32.totalorder %s113, %s114
    %p128 = scmp.eq.s32.totalorder %s15, 3
    %p129 = por %p127, %p128
    %p131 = scmp.ne.s32.totalorder %s114, %s130
    %p132 = scmp.eq.s32.totalorder %s15, 0
    %p133 = por %p131, %p132
    %p134 = scmp.le.s32.totalorder 1, %s9
    %p135 = scmp.lt.s32.totalorder %s9, 5
    %p136 = pnand %p134, %p135
    %p137 = pneg %p136
    // Predicated region
    $region9: #{tpu_custom_call.1} parent=5 // pred_check
      _
    $region10: #{tpu_custom_call.1} parent=5 // pred_check_branch
      %139 = sbr.rel (%p136) target = $region12
    $region11: #{tpu_custom_call.1} parent=5 // pred_region
      %s140 = ssub.s32 %s9, 1
      // Predicated region
      $region13: #{tpu_custom_call.1} parent=11 // pred_check
        %p141 = pneg %p98
      $region14: #{tpu_custom_call.1} parent=11 // pred_check_branch
        %143 = sbr.rel (%p141) target = $region16
      $region15: #{tpu_custom_call.1} parent=11 // pred_region
        _
      $region16: #{tpu_custom_call.1} parent=11 // pred_fallthru
        _
    $region12: #{tpu_custom_call.1} parent=5 // pred_fallthru
      _
    %p144 = scmp.lt.s32.totalorder %s9, 4
    // Predicated region
    $region17: #{tpu_custom_call.1} parent=5 // pred_check
      %p145 = pneg %p144
    $region18: #{tpu_custom_call.1} parent=5 // pred_check_branch
      %147 = sbr.rel (%p145) target = $region20
    $region19: #{tpu_custom_call.1} parent=5 // pred_region
      // Predicated region
      $region21: #{tpu_custom_call.1} parent=19 // pred_check
        %p148 = pneg %p43
      $region22: #{tpu_custom_call.1} parent=19 // pred_check_branch
        %150 = sbr.rel (%p148) target = $region24
      $region23: #{tpu_custom_call.1} parent=19 // pred_region
        %p151 = scmp.lt.s32.totalorder %s16, 1
        %s152 = scalar_select %p151, %s16, 1
        %p153 = scmp.lt.s32.totalorder %s17, 1
        %s154 = scalar_select %p153, %s17, 1
        %s155 = smul.addr %s152, 2
        %s156 = sadd.s32 %s154, %s155
        %s157 = smul.addr %s156, 4
        %s158 = scalar_lea.vmem %s0, %s157
      $region24: #{tpu_custom_call.1} parent=19 // pred_fallthru
        _
      // Predicated region
      $region25: #{tpu_custom_call.1} parent=19 // pred_check
        %p159 = pneg %p71
      $region26: #{tpu_custom_call.1} parent=19 // pred_check_branch
        %161 = sbr.rel (%p159) target = $region28
      $region27: #{tpu_custom_call.1} parent=19 // pred_region
        %p162 = scmp.lt.s32.totalorder %s16, 1
        %s163 = scalar_select %p162, %s16, 1
        %p164 = scmp.lt.s32.totalorder %s17, 1
        %s165 = scalar_select %p164, %s17, 1
        %s166 = smul.addr %s165, 2
        %s167 = smul.addr %s163, 4
        %s168 = sadd.s32 %s166, %s167
        %s169 = smul.addr %s168, 4
        %s170 = scalar_lea.vmem %s1, %s169
      $region28: #{tpu_custom_call.1} parent=19 // pred_fallthru
        _
    $region20: #{tpu_custom_call.1} parent=5 // pred_fallthru
      _
    %p171 = scmp.le.s32.totalorder 1, %s9
    %p172 = scmp.lt.s32.totalorder %s9, 5
    %p173 = pnand %p171, %p172
    %p174 = pneg %p173
    // Predicated region
    $region29: #{tpu_custom_call.1} parent=5 // pred_check
      _
    $region30: #{tpu_custom_call.1} parent=5 // pred_check_branch
      %176 = sbr.rel (%p173) target = $region32
    $region31: #{tpu_custom_call.1} parent=5 // pred_region
      %s177 = ssub.s32 %s9, 1
      %p178 = scmp.lt.s32.totalorder %s18, 1
      %s179 = scalar_select %p178, %s18, 1
      %p180 = scmp.lt.s32.totalorder %s19, 1
      %s181 = scalar_select %p180, %s19, 1
      %s182 = smul.addr %s179, 2
      %s183 = sadd.s32 %s181, %s182
      %s184 = smul.addr %s183, 4
      %s185 = scalar_lea.vmem %s0, %s184
      %p186 = pneg %p49
      %p187 = pneg %p46
      %p188 = scmp.lt.s32.totalorder %s18, 1
      %s189 = scalar_select %p188, %s18, 1
      %p190 = scmp.lt.s32.totalorder %s19, 1
      %s191 = scalar_select %p190, %s19, 1
      %s192 = smul.addr %s191, 2
      %s193 = smul.addr %s189, 4
      %s194 = sadd.s32 %s192, %s193
      %s195 = smul.addr %s194, 4
      %s196 = scalar_lea.vmem %s1, %s195
      %p197 = pneg %p77
      %p198 = pneg %p74
      %p199 = pneg %p98
      %p200 = pneg %p95
      %p201 = pneg %p126
      %p202 = pneg %p123
      %s203 = smul.u32 16, %s19
      %p204 = scmp.lt.s32.totalorder %s18, 1
      %s205 = scalar_select %p204, %s18, 1
      %p206 = scmp.lt.s32.totalorder %s203, 31
      %s207 = scalar_select %p206, %s203, 31
      %s208 = smul.addr %s205, 32
      %s209 = sadd.s32 %s207, %s208
      %s210 = smul.addr %s209, 8
      %s211 = scalar_lea.vmem %s3, %s210
      %p212 = scmp.lt.s32.totalorder %s18, 1
      %s213 = scalar_select %p212, %s18, 1
      %p214 = scmp.lt.s32.totalorder %s19, 1
      %s215 = scalar_select %p214, %s19, 1
      %s216 = smul.addr %s213, 2
      %s217 = sadd.s32 %s215, %s216
      %s218 = smul.addr %s217, 4
      %s219 = scalar_lea.vmem %s0, %s218
      %p220 = scmp.lt.s32.totalorder %s18, 1
      %s221 = scalar_select %p220, %s18, 1
      %p222 = scmp.lt.s32.totalorder %s19, 1
      %s223 = scalar_select %p222, %s19, 1
      %s224 = smul.addr %s223, 2
      %s225 = smul.addr %s221, 4
      %s226 = sadd.s32 %s224, %s225
      %s227 = smul.addr %s226, 4
      %s228 = scalar_lea.vmem %s1, %s227
      %s229 = smul.u32 16, %s19
      %p230 = scmp.lt.s32.totalorder %s18, 1
      %s231 = scalar_select %p230, %s18, 1
      %p232 = scmp.lt.s32.totalorder %s229, 31
      %s233 = scalar_select %p232, %s229, 31
      %s234 = smul.addr %s231, 32
      %s235 = sadd.s32 %s233, %s234
      %s236 = smul.addr %s235, 8
      %s237 = scalar_lea.vmem %s3, %s236
      %s238 = smul.u32 16, %s19
      %v242 = vld [vmem:[%s219] sm:$0xf]
      %v243 = vld [vmem:[%s228] sm:$0xf]
      %s244 = scalar_lea.vmem %s228, 4
      %v245 = vld [vmem:[%s244] sm:$0xf]
      %v247 = vunpack.c.l.b16 %v242
      %v248 = vpack.c.b16 %v247, %v247
      %249 = vrot.lane.b32.xlu0 %v248, 17
      %v250 = vpop.permute.xlu0 %249
      %v252 = vunpack.c.l.b16 %v245
      %v253 = vpack.c.b16 %v252, %v252
      %254 = vrot.lane.b32.xlu0 %v253, 17
      %v255 = vpop.permute.xlu0 %254
      %vm256 = vcmask 138240
      %v259 = vsel %vm256, %v243, %v250
      %v262 = vsel %vm256, %v250, %v255
      %v264 = vlaneseq
      %v265 = vand.u32 %v264, 127
      %v266 = vadd.s32 %v265, 128
      %v267 = vsub.s32 %v265, 1
      %v268 = vsub.s32 %v266, 1
      %vm269 = vcmp.lt.s32.totalorder %v267, 0
      %v270 = vsub.s32 0, %v267
      %v271 = vsel %vm269, %v270, %v267
      %v272 = vshrl.u32 %v271, 4
      %v273 = vand.u32 %v271, 15
      %v274 = vsub.s32 0, %v273
      %v275 = vsel %vm269, %v274, %v273
      %vm276 = vcmp.lt.s32.totalorder %v268, 0
      %v277 = vsub.s32 0, %v268
      %v278 = vsel %vm276, %v277, %v268
      %v279 = vshrl.u32 %v278, 4
      %v280 = vand.u32 %v278, 15
      %v281 = vsub.s32 0, %v280
      %v282 = vsel %vm276, %v281, %v280
      %vm283 = vcmp.ne.s32.totalorder %v275, 0
      %vm284 = vcmp.ne.s32.totalorder %v282, 0
      %vm285 = vcmp.lt.s32.totalorder %v275, 0
      %vm286 = vcmp.lt.s32.totalorder %v282, 0
      %vm287 = vmand %vm285, %vm283
      %vm288 = vmand %vm286, %vm284
      %v289 = vadd.s32 %v275, 16
      %v290 = vadd.s32 %v282, 16
      %v291 = vsel %vm287, %v289, %v275
      %v292 = vsel %vm288, %v290, %v282
      %vm293 = vcmp.eq.s32.totalorder %v291, 15
      %vm294 = vcmp.eq.s32.totalorder %v292, 15
      %v295 = vsel %vm293, 1, 0
      %v296 = vsel %vm294, 1, 0
      %vm297 = vcmp.eq.s32.totalorder %v295, 1
      %vm298 = vcmp.eq.s32.totalorder %v296, 1
      %vm299 = vmpackc.low %vm298, %vm297
      %v300 = vsel %vm299, 65537, 0
      %v301 = vlaneseq
      %v302 = vshrl.u32 %v301, 7
      %v303 = vsub.s32 0, %v302
      %v304 = vrot.slane %v300, %v303
      %v305 = vlaneseq
      %v306 = vshrl.u32 %v305, 7
      %v307 = vsub.s32 4, %v306
      %v308 = vrot.slane %v300, %v307
      %vm309 = vcmp.ne.s16.totalorder %v304, 0
      %vm310 = vcmp.ne.s16.totalorder %v308, 0
      %v311 = vsel %vm309, 0, %v259
      %v312 = vsel %vm310, 0, %v262
      %vm313 = vcmp.eq.s32.totalorder %v291, 0
      %vm314 = vcmp.eq.s32.totalorder %v292, 0
      %v315 = vsel %vm313, 1, 0
      %v316 = vsel %vm314, 1, 0
      %vm317 = vcmp.eq.s32.totalorder %v315, 1
      %vm318 = vcmp.eq.s32.totalorder %v316, 1
      %vm319 = vmpackc.low %vm318, %vm317
      %v320 = vsel %vm319, 65537, 0
      %v321 = vlaneseq
      %v322 = vshrl.u32 %v321, 7
      %v323 = vsub.s32 0, %v322
      %v324 = vrot.slane %v320, %v323
      %v325 = vlaneseq
      %v326 = vshrl.u32 %v325, 7
      %v327 = vsub.s32 4, %v326
      %v328 = vrot.slane %v320, %v327
      %vm329 = vcmp.ne.s16.totalorder %v324, 0
      %vm330 = vcmp.ne.s16.totalorder %v328, 0
      %v331 = vsel %vm329, 0, %v259
      %v332 = vsel %vm330, 0, %v262
      %333 = vst [vmem:[#allocation2] sm:$0xf] %v311
      %v336 = vunpack.c.l.b16 %v259
      %v337 = vunpack.c.l.b16 %v262
      %v338 = vpack.c.b16 %v337, %v336
      %339 = vrot.lane.b32.xlu0 %v338, 127
      %v340 = vpop.permute.xlu0 %339
      %v341 = vrot.slane %v340, 4
      %vm342 = vcmask 1039360
      %v343 = vsel %vm342, %v340, %v341
      %345 = vst [vmem:[#allocation2 + $0x4] sm:$0xf] %v343
      %v348 = vunpack.c.l.b16 %v331
      %v349 = vunpack.c.l.b16 %v332
      %v350 = vpack.c.b16 %v349, %v348
      %351 = vrot.lane.b32.xlu0 %v350, 126
      %v352 = vpop.permute.xlu0 %351
      %v353 = vrot.slane %v352, 4
      %vm354 = vcmask 1031168
      %v355 = vsel %vm354, %v352, %v353
      %357 = vst [vmem:[#allocation2 + $0x8] sm:$0xf] %v355
      %v360 = vunpack.c.l.b16 %v311
      %v361 = vunpack.c.l.b16 %v312
      %v362 = vpack.c.b16 %v361, %v360
      %363 = vrot.lane.b32.xlu0 %v362, 112
      %v364 = vpop.permute.xlu0 %363
      %v365 = vrot.slane %v364, 4
      %vm366 = vcmask 916480
      %v367 = vsel %vm366, %v364, %v365
      %369 = vst [vmem:[#allocation2 + $0xc] sm:$0xf] %v367
      %370 = vrot.lane.b32.xlu0 %v338, 111
      %v371 = vpop.permute.xlu0 %370
      %v372 = vrot.slane %v371, 4
      %vm373 = vcmask 908288
      %v374 = vsel %vm373, %v371, %v372
      %376 = vst [vmem:[#allocation2 + $0x10] sm:$0xf] %v374
      %377 = vrot.lane.b32.xlu0 %v350, 110
      %v378 = vpop.permute.xlu0 %377
      %v379 = vrot.slane %v378, 4
      %vm380 = vcmask 900096
      %v381 = vsel %vm380, %v378, %v379
      %383 = vst [vmem:[#allocation2 + $0x14] sm:$0xf] %v381
      %384 = vrot.lane.b32.xlu0 %v362, 96
      %v385 = vpop.permute.xlu0 %384
      %v386 = vrot.slane %v385, 4
      %vm387 = vcmask 785408
      %v388 = vsel %vm387, %v385, %v386
      %390 = vst [vmem:[#allocation2 + $0x18] sm:$0xf] %v388
      %391 = vrot.lane.b32.xlu0 %v338, 95
      %v392 = vpop.permute.xlu0 %391
      %v393 = vrot.slane %v392, 4
      %vm394 = vcmask 777216
      %v395 = vsel %vm394, %v392, %v393
      %397 = vst [vmem:[#allocation2 + $0x1c] sm:$0xf] %v395
      %398 = vrot.lane.b32.xlu0 %v350, 94
      %v399 = vpop.permute.xlu0 %398
      %v400 = vrot.slane %v399, 4
      %vm401 = vcmask 769024
      %v402 = vsel %vm401, %v399, %v400
      %404 = vst [vmem:[#allocation2 + $0x20] sm:$0xf] %v402
      %v405 = vld [vmem:[#allocation2] sm:$0xf]
      %v406 = vld [vmem:[#allocation2 + $0x4] sm:$0xf]
      %v407 = vld [vmem:[#allocation2 + $0x8] sm:$0xf]
      %v408 = vld [vmem:[#allocation2 + $0xc] sm:$0xf]
      %v409 = vld [vmem:[#allocation2 + $0x10] sm:$0xf]
      %v410 = vld [vmem:[#allocation2 + $0x14] sm:$0xf]
      %v411 = vld [vmem:[#allocation2 + $0x18] sm:$0xf]
      %v412 = vld [vmem:[#allocation2 + $0x1c] sm:$0xf]
      %v413 = vld [vmem:[#allocation2 + $0x20] sm:$0xf]
      %v414 = vld [vmem:[%s2] sm:$0xf]
      %v415 = vld [vmem:[%s2 + $0x4] sm:$0xf]
      %v416 = vld [vmem:[%s2 + $0x8] sm:$0xf]
      %v417 = vld [vmem:[%s2 + $0xc] sm:$0xf]
      %v418 = vld [vmem:[%s2 + $0x10] sm:$0xf]
      %v419 = vld [vmem:[%s2 + $0x14] sm:$0xf]
      %v420 = vld [vmem:[%s2 + $0x18] sm:$0xf]
      %v421 = vld [vmem:[%s2 + $0x1c] sm:$0xf]
      %v422 = vld [vmem:[%s2 + $0x20] sm:$0xf]
      %v432 = vunpack.c.l.b16 %v405
      %v433 = vunpack.c.l.b16 %v406
      %v434 = vunpack.c.l.b16 %v407
      %v435 = vunpack.c.l.b16 %v408
      %v436 = vunpack.c.l.b16 %v409
      %v437 = vunpack.c.l.b16 %v410
      %v438 = vunpack.c.l.b16 %v411
      %v439 = vunpack.c.l.b16 %v412
      %v440 = vunpack.c.l.b16 %v413
      %v441 = vpack.c.b16 %v433, %v432
      %v442 = vpack.c.b16 %v435, %v434
      %v443 = vpack.c.b16 %v437, %v436
      %v444 = vpack.c.b16 %v439, %v438
      %v445 = vpack.c.b16 %v440, %v440
      %451 = vxpose.xlu0.c.b16.start [1/8] %v441, 128
      %452 = vxpose.xlu0.c.b16.cont [2/8] %v442, 128
      %453 = vxpose.xlu0.c.b16.cont [3/8] %v443, 128
      %454 = vxpose.xlu0.c.b16.cont [4/8] %v444, 128
      %455 = vxpose.xlu0.c.b16.cont [5/8] %v445, 128
      %456 = vxpose.xlu0.c.b16.cont [6/8] 0, 128
      %457 = vxpose.xlu0.c.b16.cont [7/8] 0, 128
      %458 = vxpose.xlu0.c.b16.end [8/8] 0, 128
      %v459 = vpop.trf.xlu0
      %v460 = vpop.trf.xlu0
      %v461 = vpop.trf.xlu0
      %v462 = vpop.trf.xlu0
      %v463 = vpop.trf.xlu0
      %v464 = vpop.trf.xlu0
      %v465 = vpop.trf.xlu0
      %v466 = vpop.trf.xlu0
      %v476 = vunpack.c.l.b16 %v414
      %v477 = vunpack.c.l.b16 %v415
      %v478 = vunpack.c.l.b16 %v416
      %v479 = vunpack.c.l.b16 %v417
      %v480 = vunpack.c.l.b16 %v418
      %v481 = vunpack.c.l.b16 %v419
      %v482 = vunpack.c.l.b16 %v420
      %v483 = vunpack.c.l.b16 %v421
      %v484 = vunpack.c.l.b16 %v422
      %v485 = vpack.c.b16 %v477, %v476
      %v486 = vpack.c.b16 %v479, %v478
      %v487 = vpack.c.b16 %v481, %v480
      %v488 = vpack.c.b16 %v483, %v482
      %v489 = vpack.c.b16 %v484, %v484
      %vm494 = vcmask 588800
      %v496 = vsel %vm494, %v459, 0
      %v499 = vsel %vm494, %v460, 0
      %v502 = vsel %vm494, %v461, 0
      %v505 = vsel %vm494, %v462, 0
      %v508 = vsel %vm494, %v463, 0
      %v511 = vsel %vm494, %v464, 0
      %v514 = vsel %vm494, %v465, 0
      %v517 = vsel %vm494, %v466, 0
      %vm519 = vcmask 1043456
      %v521 = vsel %vm519, %v489, 0
      %523 = vmatprep.subr.bf16.mxu0 0
      %524 = vmatpush1.bf16.msra.mxu0 %v485
      %525 = vmatprep.subr.bf16.mxu0 0
      %526 = vmatpush1.bf16.msra.mxu0 %v486
      %527 = vmatprep.subr.bf16.mxu0 0
      %528 = vmatpush1.bf16.msra.mxu0 %v487
      %529 = vmatprep.subr.bf16.mxu0 0
      %530 = vmatpush1.bf16.msra.mxu0 %v488
      %531 = vmatprep.subr.bf16.mxu0 0
      %532 = vmatpush1.bf16.msra.mxu0 %v521
      %533 = vmatprep.subr.bf16.mxu0 0
      %534 = vmatpush1.bf16.msra.mxu0 0
      %535 = vmatprep.subr.bf16.mxu0 0
      %536 = vmatpush1.bf16.msra.mxu0 0
      %537 = vmatprep.subr.bf16.mxu0 0
      %538 = vmatpush1.bf16.msra.mxu0 0
      %539 = vmatprep.subr.bf16.mxu0 0
      %540 = vmatpush1.bf16.msra.mxu0 0
      %541 = vmatprep.subr.bf16.mxu0 0
      %542 = vmatpush1.bf16.msra.mxu0 0
      %543 = vmatprep.subr.bf16.mxu0 0
      %544 = vmatpush1.bf16.msra.mxu0 0
      %545 = vmatprep.subr.bf16.mxu0 0
      %546 = vmatpush1.bf16.msra.mxu0 0
      %547 = vmatprep.subr.bf16.mxu0 0
      %548 = vmatpush1.bf16.msra.mxu0 0
      %549 = vmatprep.subr.bf16.mxu0 0
      %550 = vmatpush1.bf16.msra.mxu0 0
      %551 = vmatprep.subr.bf16.mxu0 0
      %552 = vmatpush1.bf16.msra.mxu0 0
      %553 = vmatprep.subr.bf16.mxu0 0
      %554 = vmatpush1.bf16.msra.mxu0 0
      %555 = vmatprep.mubr.bf16.mxu0 0
      %556 = vmatmul.mubr.bf16.gmra.mrb[0].mxu0 %v496
      %v557 = vpop.f32.mrb[0].mxu0
      %v558 = vadd.f32 0.0, %v557
      %v559 = vpop.f32.mrb[0].mxu0
      %v560 = vpop.f32.mrb[0].mxu0
      %v561 = vadd.f32 0.0, %v560
      %v562 = vpop.f32.mrb[0].mxu0
      %563 = vmatprep.mubr.bf16.mxu0 0
      %564 = vmatmul.mubr.bf16.gmra.mrb[0].mxu0 %v499
      %v565 = vpop.f32.mrb[0].mxu0
      %v566 = vadd.f32 0.0, %v565
      %v567 = vpop.f32.mrb[0].mxu0
      %v568 = vpop.f32.mrb[0].mxu0
      %v569 = vadd.f32 0.0, %v568
      %v570 = vpop.f32.mrb[0].mxu0
      %571 = vmatprep.mubr.bf16.mxu0 0
      %572 = vmatmul.mubr.bf16.gmra.mrb[0].mxu0 %v502
      %v573 = vpop.f32.mrb[0].mxu0
      %v574 = vadd.f32 0.0, %v573
      %v575 = vpop.f32.mrb[0].mxu0
      %v576 = vpop.f32.mrb[0].mxu0
      %v577 = vadd.f32 0.0, %v576
      %v578 = vpop.f32.mrb[0].mxu0
      %579 = vmatprep.mubr.bf16.mxu0 0
      %580 = vmatmul.mubr.bf16.gmra.mrb[0].mxu0 %v505
      %v581 = vpop.f32.mrb[0].mxu0
      %v582 = vadd.f32 0.0, %v581
      %v583 = vpop.f32.mrb[0].mxu0
      %v584 = vpop.f32.mrb[0].mxu0
      %v585 = vadd.f32 0.0, %v584
      %v586 = vpop.f32.mrb[0].mxu0
      %587 = vmatprep.mubr.bf16.mxu0 0
      %588 = vmatmul.mubr.bf16.gmra.mrb[0].mxu0 %v508
      %v589 = vpop.f32.mrb[0].mxu0
      %v590 = vadd.f32 0.0, %v589
      %v591 = vpop.f32.mrb[0].mxu0
      %v592 = vpop.f32.mrb[0].mxu0
      %v593 = vadd.f32 0.0, %v592
      %v594 = vpop.f32.mrb[0].mxu0
      %595 = vmatprep.mubr.bf16.mxu0 0
      %596 = vmatmul.mubr.bf16.gmra.mrb[0].mxu0 %v511
      %v597 = vpop.f32.mrb[0].mxu0
      %v598 = vadd.f32 0.0, %v597
      %v599 = vpop.f32.mrb[0].mxu0
      %v600 = vpop.f32.mrb[0].mxu0
      %v601 = vadd.f32 0.0, %v600
      %v602 = vpop.f32.mrb[0].mxu0
      %603 = vmatprep.mubr.bf16.mxu0 0
      %604 = vmatmul.mubr.bf16.gmra.mrb[0].mxu0 %v514
      %v605 = vpop.f32.mrb[0].mxu0
      %v606 = vadd.f32 0.0, %v605
      %v607 = vpop.f32.mrb[0].mxu0
      %v608 = vpop.f32.mrb[0].mxu0
      %v609 = vadd.f32 0.0, %v608
      %v610 = vpop.f32.mrb[0].mxu0
      %611 = vmatprep.mubr.bf16.mxu0 0
      %612 = vmatmul.mubr.bf16.gmra.mrb[0].mxu0 %v517
      %v613 = vpop.f32.mrb[0].mxu0
      %v614 = vadd.f32 0.0, %v613
      %v615 = vpop.f32.mrb[0].mxu0
      %v616 = vpop.f32.mrb[0].mxu0
      %v617 = vadd.f32 0.0, %v616
      %v618 = vpop.f32.mrb[0].mxu0
      %619 = vdwg.mxu0
      %vm620 = vcmask 392192
      %621 = vst.msk [vmem:[%s237] sm:$0xff] %vm620, %v558
      %622 = vst.msk [vmem:[%s237 + $0x8] sm:$0xff] %vm620, %v561
      %623 = vst.msk [vmem:[%s237 + $0x10] sm:$0xff] %vm620, %v566
      %624 = vst.msk [vmem:[%s237 + $0x18] sm:$0xff] %vm620, %v569
      %625 = vst.msk [vmem:[%s237 + $0x20] sm:$0xff] %vm620, %v574
      %626 = vst.msk [vmem:[%s237 + $0x28] sm:$0xff] %vm620, %v577
      %627 = vst.msk [vmem:[%s237 + $0x30] sm:$0xff] %vm620, %v582
      %628 = vst.msk [vmem:[%s237 + $0x38] sm:$0xff] %vm620, %v585
      %629 = vst.msk [vmem:[%s237 + $0x40] sm:$0xff] %vm620, %v590
      %630 = vst.msk [vmem:[%s237 + $0x48] sm:$0xff] %vm620, %v593
      %631 = vst.msk [vmem:[%s237 + $0x50] sm:$0xff] %vm620, %v598
      %632 = vst.msk [vmem:[%s237 + $0x58] sm:$0xff] %vm620, %v601
      %633 = vst.msk [vmem:[%s237 + $0x60] sm:$0xff] %vm620, %v606
      %634 = vst.msk [vmem:[%s237 + $0x68] sm:$0xff] %vm620, %v609
      %635 = vst.msk [vmem:[%s237 + $0x70] sm:$0xff] %vm620, %v614
      %636 = vst.msk [vmem:[%s237 + $0x78] sm:$0xff] %vm620, %v617
      %s637 = smul.u32 16, %s19
      %p638 = scmp.lt.s32.totalorder %s18, 1
      %s639 = scalar_select %p638, %s18, 1
      %p640 = scmp.lt.s32.totalorder %s637, 31
      %s641 = scalar_select %p640, %s637, 31
      %s642 = smul.addr %s639, 32
      %s643 = sadd.s32 %s641, %s642
      %s644 = smul.addr %s643, 8
      %s645 = scalar_lea.vmem %s3, %s644
      // Predicated region
      $region33: #{tpu_custom_call.1} parent=31 // pred_check
        %p646 = pneg %p123
      $region34: #{tpu_custom_call.1} parent=31 // pred_check_branch
        %648 = sbr.rel (%p646) target = $region36
      $region35: #{tpu_custom_call.1} parent=31 // pred_region
        %s649 = smul.u32 16, %s19
      $region36: #{tpu_custom_call.1} parent=31 // pred_fallthru
        _
    $region32: #{tpu_custom_call.1} parent=5 // pred_fallthru
      _
    %p650 = scmp.le.s32.totalorder 2, %s9
    // Predicated region
    $region37: #{tpu_custom_call.1} parent=5 // pred_check
      %p651 = pneg %p650
    $region38: #{tpu_custom_call.1} parent=5 // pred_check_branch
      %653 = sbr.rel (%p651) target = $region40
    $region39: #{tpu_custom_call.1} parent=5 // pred_region
      %s654 = ssub.s32 %s9, 2
      // Predicated region
      $region41: #{tpu_custom_call.1} parent=39 // pred_check
        %p655 = pneg %p129
      $region42: #{tpu_custom_call.1} parent=39 // pred_check_branch
        %657 = sbr.rel (%p655) target = $region44
      $region43: #{tpu_custom_call.1} parent=39 // pred_region
        %s658 = smul.u32 16, %s21
        %p659 = scmp.lt.s32.totalorder %s20, 1
        %s660 = scalar_select %p659, %s20, 1
        %p661 = scmp.lt.s32.totalorder %s658, 31
        %s662 = scalar_select %p661, %s658, 31
        %s663 = smul.addr %s660, 32
        %s664 = sadd.s32 %s662, %s663
        %s665 = smul.addr %s664, 8
        %s666 = scalar_lea.vmem %s3, %s665
      $region44: #{tpu_custom_call.1} parent=39 // pred_fallthru
        _
    $region40: #{tpu_custom_call.1} parent=5 // pred_fallthru
      _
  $region6: #{tpu_custom_call.1} parent=0 // loop_footer
    %s13 = sadd.s32 1, %s9
  $region7: #{tpu_custom_call.1} parent=0 // loop_footer_branch
    %8 = sbr.rel target = $region3
  $region8: #{tpu_custom_call.1} parent=0 // loop_exit
    _

</llo_original>
